<compile_context>
chip_gen: v5e
topology: v5e:2x2
jax: 0.10.0
libtpu: 0.0.40
codegen_flags: <defaults>
</compile_context>

<pallas_src>
import jax
import jax.numpy as jnp
from jax.experimental import pallas as pl
from jax.experimental.pallas import tpu as pltpu


MAX_TILE_M = 1024      # bf16 row tile for the conv matmul
LANE = 128             # output-channel padding target (lane width)


def _round_up(x, m):
    return (x + m - 1) // m * m


def _row_tile(m):
    if m >= MAX_TILE_M:
        return MAX_TILE_M
    return max(16, _round_up(m, 16))


# ----------------------------- Pallas kernels -----------------------------

def _matmul_bias_relu_kernel(p_ref, w_ref, b_ref, o_ref):
    # (TM, Kp) bf16 @ (Kp, 128) bf16 -> f32 acc, + bias (1,128) f32, ReLU, store (bf16).
    acc = jnp.dot(p_ref[...], w_ref[...], preferred_element_type=jnp.float32)
    o_ref[...] = jnp.maximum(acc + b_ref[...], 0.0).astype(o_ref.dtype)


def _conv_pool_kernel(p_ref, w_ref, b_ref, o_ref):
    # per-sample conv3 + ReLU + global average pool, all resident in VMEM.
    x = p_ref[0]                                                    # (M3, Kp) bf16
    acc = jnp.dot(x, w_ref[...], preferred_element_type=jnp.float32)
    act = jnp.maximum(acc + b_ref[...], 0.0)                        # (M3, 128) f32
    o_ref[0] = jnp.mean(act, axis=0, keepdims=True).astype(o_ref.dtype)


# ----------------------------- wrappers -----------------------------------

def im2col(x_nhwc, kh, kw, stride, pad, k_align=LANE):
    """Conv patches -> (N*OH*OW, Kp) with element order (kh, kw, C); K zero-padded to k_align."""
    N, H, W, C = x_nhwc.shape
    xp = jnp.pad(x_nhwc, ((0, 0), (pad, pad), (pad, pad), (0, 0)))
    OH = (H + 2 * pad - kh) // stride + 1
    OW = (W + 2 * pad - kw) // stride + 1
    cols = []
    for i in range(kh):
        for j in range(kw):
            cols.append(xp[:, i:i + stride * OH:stride, j:j + stride * OW:stride, :])
    pat = jnp.stack(cols, axis=3)                       # (N, OH, OW, kh*kw, C)
    K = kh * kw * C
    pat = pat.reshape(N * OH * OW, K)
    Kp = _round_up(K, k_align)
    if Kp != K:                                         # fused zero-concat (no scatter copy)
        pat = jnp.concatenate(
            [pat, jnp.zeros((N * OH * OW, Kp - K), pat.dtype)], axis=-1)
    return pat, OH, OW


def _pad_weights(w_oihw, bias, Kp):
    out_ch, in_ch, kh, kw = w_oihw.shape
    K = kh * kw * in_ch
    lane = _round_up(out_ch, LANE)
    # (O, I, KH, KW) -> (KH, KW, I, O) -> (K, O), matching the im2col element order.
    w2d = jnp.transpose(w_oihw, (2, 3, 1, 0)).reshape(K, out_ch)
    w_pad = jnp.zeros((Kp, lane), jnp.bfloat16).at[:K, :out_ch].set(w2d.astype(jnp.bfloat16))
    b_pad = jnp.zeros((1, lane), jnp.float32).at[0, :out_ch].set(bias.astype(jnp.float32))
    return w_pad, b_pad, lane


def conv2d_relu(x_nhwc, w_oihw, bias, stride, pad):
    """nn.Conv2d(stride, pad) + ReLU as a tiled, pipelined im2col matmul."""
    out_ch, in_ch, kh, kw = w_oihw.shape
    N = x_nhwc.shape[0]
    patches, OH, OW = im2col(x_nhwc.astype(jnp.bfloat16), kh, kw, stride, pad)
    M, Kp = patches.shape
    w_pad, b_pad, lane = _pad_weights(w_oihw, bias, Kp)

    TM = _row_tile(M)
    grid = (pl.cdiv(M, TM),)
    cost = pl.CostEstimate(
        flops=2 * M * Kp * lane,
        transcendentals=0,
        bytes_accessed=int(M * Kp * 2 + Kp * lane * 2 + lane * 4 + M * lane * 2),
    )
    y = pl.pallas_call(
        _matmul_bias_relu_kernel,
        out_shape=jax.ShapeDtypeStruct((M, lane), jnp.bfloat16),
        grid=grid,
        in_specs=[
            pl.BlockSpec((TM, Kp), lambda i: (i, 0)),
            pl.BlockSpec((Kp, lane), lambda i: (0, 0)),
            pl.BlockSpec((1, lane), lambda i: (0, 0)),
        ],
        out_specs=pl.BlockSpec((TM, lane), lambda i: (i, 0)),
        compiler_params=pltpu.CompilerParams(
            dimension_semantics=("parallel",),
            vmem_limit_bytes=32 * 1024 * 1024),
        cost_estimate=cost,
    )(patches, w_pad, b_pad)
    # slice away the lane padding; this fuses into the next layer's im2col glue.
    return y[:, :out_ch].reshape(N, OH, OW, out_ch)


def conv2d_relu_avgpool(x_nhwc, w_oihw, bias, stride, pad):
    """conv3 + ReLU + AdaptiveAvgPool2d(1) fused in one pallas_call (grid over batch)."""
    out_ch, in_ch, kh, kw = w_oihw.shape
    N = x_nhwc.shape[0]
    patches, OH, OW = im2col(x_nhwc.astype(jnp.bfloat16), kh, kw, stride, pad)
    Kp = patches.shape[1]
    M3 = OH * OW
    patches = patches.reshape(N, M3, Kp)
    w_pad, b_pad, lane = _pad_weights(w_oihw, bias, Kp)

    cost = pl.CostEstimate(
        flops=2 * N * M3 * Kp * lane,
        transcendentals=0,
        bytes_accessed=int(N * M3 * Kp * 2 + Kp * lane * 2 + lane * 4 + N * lane * 4),
    )
    out = pl.pallas_call(
        _conv_pool_kernel,
        out_shape=jax.ShapeDtypeStruct((N, 1, lane), jnp.float32),
        grid=(N,),
        in_specs=[
            pl.BlockSpec((1, M3, Kp), lambda n: (n, 0, 0)),
            pl.BlockSpec((Kp, lane), lambda n: (0, 0)),
            pl.BlockSpec((1, lane), lambda n: (0, 0)),
        ],
        out_specs=pl.BlockSpec((1, 1, lane), lambda n: (n, 0, 0)),
        compiler_params=pltpu.CompilerParams(
            dimension_semantics=("parallel",),
            vmem_limit_bytes=32 * 1024 * 1024),
        cost_estimate=cost,
    )(patches, w_pad, b_pad)
    return out[:, 0, :out_ch]                              # (N, out_ch) f32


# ----------------------------- ConditionNet -------------------------------

def init_params(key, in_ch=3, nf=32):
    """PyTorch-style uniform(+-1/sqrt(fan_in)) conv init."""
    ks = jax.random.split(key, 6)

    def conv_init(kw_, kb_, out_c, in_c, kh, kw):
        fan_in = in_c * kh * kw
        bound = 1.0 / (fan_in ** 0.5)
        w = jax.random.uniform(kw_, (out_c, in_c, kh, kw), jnp.float32, -bound, bound)
        b = jax.random.uniform(kb_, (out_c,), jnp.float32, -bound, bound)
        return w, b

    w1, b1 = conv_init(ks[0], ks[1], nf, in_ch, 7, 7)
    w2, b2 = conv_init(ks[2], ks[3], nf, nf, 3, 3)
    w3, b3 = conv_init(ks[4], ks[5], nf, nf, 3, 3)
    return dict(w1=w1, b1=b1, w2=w2, b2=b2, w3=w3, b3=b3)


def condition_net_forward(x_nchw, params):
    # external layout NCHW (PyTorch); internal NHWC; output (N, nf, 1, 1).
    x = jnp.transpose(x_nchw, (0, 2, 3, 1))
    out = conv2d_relu(x, params["w1"], params["b1"], stride=2, pad=1)    # conv1 7x7/s2/p1 + ReLU
    out = conv2d_relu(out, params["w2"], params["b2"], stride=2, pad=1)  # conv2 3x3/s2/p1 + ReLU
    cond = conv2d_relu_avgpool(out, params["w3"], params["b3"],          # conv3 + ReLU + avgpool
                               stride=2, pad=1)
    return cond[:, :, None, None].astype(jnp.float32)                    # (N, nf, 1, 1)


if __name__ == "__main__":
    key = jax.random.PRNGKey(0)
    k_x, k_p = jax.random.split(key)

    N, in_ch, H, W, nf = 2, 3, 16, 16, 32
    x = jax.random.normal(k_x, (N, in_ch, H, W), jnp.float32)
    params = init_params(k_p, in_ch=in_ch, nf=nf)

    fwd = jax.jit(condition_net_forward)
    cond = jax.block_until_ready(fwd(x, params))
    assert cond.shape == (N, nf, 1, 1), cond.shape
    assert bool(jnp.all(jnp.isfinite(cond)))
    print("KERNEL_OK")
</pallas_src>

<mosaic_0001>
module attributes {stable_mosaic.version = 11 : i64} {
  func.func @_matmul_bias_relu_kernel(%arg0: i32, %arg1: memref<80x256xbf16, #tpu.memory_space<vmem>>, %arg2: memref<256x128xbf16, #tpu.memory_space<vmem>>, %arg3: memref<1x128xf32, #tpu.memory_space<vmem>>, %arg4: memref<80x128xbf16, #tpu.memory_space<vmem>>) attributes {dimension_semantics = [#tpu.dimension_semantics<parallel>], iteration_bounds = array<i64: 1>, scalar_prefetch = 0 : i64, scratch_operands = 0 : i64, tpu.core_type = #tpu.core_type<tc>, window_params = [{transform_indices = @transform_0, window_bounds = array<i64: 80, 256>}, {pipeline_mode = #tpu.pipeline_mode<synchronous>, transform_indices = @transform_1, window_bounds = array<i64: 256, 128>}, {pipeline_mode = #tpu.pipeline_mode<synchronous>, transform_indices = @transform_2, window_bounds = array<i64: 1, 128>}, {transform_indices = @transform_3, window_bounds = array<i64: 80, 128>}]} {
    %c0 = arith.constant 0 : index
    %c0_0 = arith.constant 0 : index
    %0 = vector.load %arg1[%c0, %c0_0] : memref<80x256xbf16, #tpu.memory_space<vmem>>, vector<80x256xbf16>
    %c0_1 = arith.constant 0 : index
    %c0_2 = arith.constant 0 : index
    %1 = vector.load %arg2[%c0_1, %c0_2] : memref<256x128xbf16, #tpu.memory_space<vmem>>, vector<256x128xbf16>
    %cst = arith.constant dense<0.000000e+00> : vector<80x128xf32>
    %2 = tpu.matmul %0, %1, %cst {dimension_numbers = #tpu.dot_dimension_numbers<[1], [0], [0], [1], [0, 0, 1, 1], [], []>} : vector<80x256xbf16>, vector<256x128xbf16>, vector<80x128xf32> -> vector<80x128xf32>
    %c0_3 = arith.constant 0 : index
    %c0_4 = arith.constant 0 : index
    %3 = vector.load %arg3[%c0_3, %c0_4] : memref<1x128xf32, #tpu.memory_space<vmem>>, vector<1x128xf32>
    %4 = vector.broadcast %3 : vector<1x128xf32> to vector<80x128xf32>
    %5 = arith.addf %2, %4 : vector<80x128xf32>
    %cst_5 = arith.constant 0.000000e+00 : f32
    %6 = vector.broadcast %cst_5 : f32 to vector<80x128xf32>
    %7 = arith.maximumf %5, %6 : vector<80x128xf32>
    %8 = arith.truncf %7 : vector<80x128xf32> to vector<80x128xbf16>
    %c0_6 = arith.constant 0 : index
    %c0_7 = arith.constant 0 : index
    %9 = vector.load %arg4[%c0_6, %c0_7] : memref<80x128xbf16, #tpu.memory_space<vmem>>, vector<80x128xbf16>
    tpu.vector_store %arg4[%c0_6, %c0_7], %8 {strides = array<i32>} : memref<80x128xbf16, #tpu.memory_space<vmem>>, vector<80x128xbf16>,
    return
  }
  func.func @transform_0(%arg0: i32) -> (i32, i32) {
    %c0_i32 = arith.constant 0 : i32
    %c0_i32_0 = arith.constant 0 : i32
    return %arg0, %c0_i32 : i32, i32
  }
  func.func @transform_1(%arg0: i32) -> (i32, i32) {
    %c0_i32 = arith.constant 0 : i32
    %c0_i32_0 = arith.constant 0 : i32
    %c0_i32_1 = arith.constant 0 : i32
    return %c0_i32, %c0_i32_0 : i32, i32
  }
  func.func @transform_2(%arg0: i32) -> (i32, i32) {
    %c0_i32 = arith.constant 0 : i32
    %c0_i32_0 = arith.constant 0 : i32
    %c0_i32_1 = arith.constant 0 : i32
    return %c0_i32, %c0_i32_0 : i32, i32
  }
  func.func @transform_3(%arg0: i32) -> (i32, i32) {
    %c0_i32 = arith.constant 0 : i32
    %c0_i32_0 = arith.constant 0 : i32
    return %arg0, %c0_i32 : i32, i32
  }
}

module attributes {stable_mosaic.version = 11 : i64} {
  func.func @_matmul_bias_relu_kernel(%arg0: i32, %arg1: memref<32x384xbf16, #tpu.memory_space<vmem>>, %arg2: memref<384x128xbf16, #tpu.memory_space<vmem>>, %arg3: memref<1x128xf32, #tpu.memory_space<vmem>>, %arg4: memref<32x128xbf16, #tpu.memory_space<vmem>>) attributes {dimension_semantics = [#tpu.dimension_semantics<parallel>], iteration_bounds = array<i64: 1>, scalar_prefetch = 0 : i64, scratch_operands = 0 : i64, tpu.core_type = #tpu.core_type<tc>, window_params = [{transform_indices = @transform_0, window_bounds = array<i64: 32, 384>}, {pipeline_mode = #tpu.pipeline_mode<synchronous>, transform_indices = @transform_1, window_bounds = array<i64: 384, 128>}, {pipeline_mode = #tpu.pipeline_mode<synchronous>, transform_indices = @transform_2, window_bounds = array<i64: 1, 128>}, {transform_indices = @transform_3, window_bounds = array<i64: 32, 128>}]} {
    %c0 = arith.constant 0 : index
    %c0_0 = arith.constant 0 : index
    %0 = vector.load %arg1[%c0, %c0_0] : memref<32x384xbf16, #tpu.memory_space<vmem>>, vector<32x384xbf16>
    %c0_1 = arith.constant 0 : index
    %c0_2 = arith.constant 0 : index
    %1 = vector.load %arg2[%c0_1, %c0_2] : memref<384x128xbf16, #tpu.memory_space<vmem>>, vector<384x128xbf16>
    %cst = arith.constant dense<0.000000e+00> : vector<32x128xf32>
    %2 = tpu.matmul %0, %1, %cst {dimension_numbers = #tpu.dot_dimension_numbers<[1], [0], [0], [1], [0, 0, 1, 1], [], []>} : vector<32x384xbf16>, vector<384x128xbf16>, vector<32x128xf32> -> vector<32x128xf32>
    %c0_3 = arith.constant 0 : index
    %c0_4 = arith.constant 0 : index
    %3 = vector.load %arg3[%c0_3, %c0_4] : memref<1x128xf32, #tpu.memory_space<vmem>>, vector<1x128xf32>
    %4 = vector.broadcast %3 : vector<1x128xf32> to vector<32x128xf32>
    %5 = arith.addf %2, %4 : vector<32x128xf32>
    %cst_5 = arith.constant 0.000000e+00 : f32
    %6 = vector.broadcast %cst_5 : f32 to vector<32x128xf32>
    %7 = arith.maximumf %5, %6 : vector<32x128xf32>
    %8 = arith.truncf %7 : vector<32x128xf32> to vector<32x128xbf16>
    %c0_6 = arith.constant 0 : index
    %c0_7 = arith.constant 0 : index
    %9 = vector.load %arg4[%c0_6, %c0_7] : memref<32x128xbf16, #tpu.memory_space<vmem>>, vector<32x128xbf16>
    tpu.vector_store %arg4[%c0_6, %c0_7], %8 {strides = array<i32>} : memref<32x128xbf16, #tpu.memory_space<vmem>>, vector<32x128xbf16>,
    return
  }
  func.func @transform_0(%arg0: i32) -> (i32, i32) {
    %c0_i32 = arith.constant 0 : i32
    %c0_i32_0 = arith.constant 0 : i32
    return %arg0, %c0_i32 : i32, i32
  }
  func.func @transform_1(%arg0: i32) -> (i32, i32) {
    %c0_i32 = arith.constant 0 : i32
    %c0_i32_0 = arith.constant 0 : i32
    %c0_i32_1 = arith.constant 0 : i32
    return %c0_i32, %c0_i32_0 : i32, i32
  }
  func.func @transform_2(%arg0: i32) -> (i32, i32) {
    %c0_i32 = arith.constant 0 : i32
    %c0_i32_0 = arith.constant 0 : i32
    %c0_i32_1 = arith.constant 0 : i32
    return %c0_i32, %c0_i32_0 : i32, i32
  }
  func.func @transform_3(%arg0: i32) -> (i32, i32) {
    %c0_i32 = arith.constant 0 : i32
    %c0_i32_0 = arith.constant 0 : i32
    return %arg0, %c0_i32 : i32, i32
  }
}

module attributes {stable_mosaic.version = 11 : i64} {
  func.func @_conv_pool_kernel(%arg0: i32, %arg1: memref<1x4x384xbf16, #tpu.memory_space<vmem>>, %arg2: memref<384x128xbf16, #tpu.memory_space<vmem>>, %arg3: memref<1x128xf32, #tpu.memory_space<vmem>>, %arg4: memref<1x1x128xf32, #tpu.memory_space<vmem>>) attributes {dimension_semantics = [#tpu.dimension_semantics<parallel>], iteration_bounds = array<i64: 2>, scalar_prefetch = 0 : i64, scratch_operands = 0 : i64, tpu.core_type = #tpu.core_type<tc>, window_params = [{transform_indices = @transform_0, window_bounds = array<i64: 1, 4, 384>}, {pipeline_mode = #tpu.pipeline_mode<synchronous>, transform_indices = @transform_1, window_bounds = array<i64: 384, 128>}, {pipeline_mode = #tpu.pipeline_mode<synchronous>, transform_indices = @transform_2, window_bounds = array<i64: 1, 128>}, {transform_indices = @transform_3, window_bounds = array<i64: 1, 1, 128>}]} {
    %c0 = arith.constant 0 : index
    %c0_0 = arith.constant 0 : index
    %c0_1 = arith.constant 0 : index
    %0 = vector.load %arg1[%c0, %c0_0, %c0_1] : memref<1x4x384xbf16, #tpu.memory_space<vmem>>, vector<1x4x384xbf16>
    %1 = vector.shape_cast %0 : vector<1x4x384xbf16> to vector<4x384xbf16>
    %c0_2 = arith.constant 0 : index
    %c0_3 = arith.constant 0 : index
    %2 = vector.load %arg2[%c0_2, %c0_3] : memref<384x128xbf16, #tpu.memory_space<vmem>>, vector<384x128xbf16>
    %cst = arith.constant dense<0.000000e+00> : vector<4x128xf32>
    %3 = tpu.matmul %1, %2, %cst {dimension_numbers = #tpu.dot_dimension_numbers<[1], [0], [0], [1], [0, 0, 1, 1], [], []>} : vector<4x384xbf16>, vector<384x128xbf16>, vector<4x128xf32> -> vector<4x128xf32>
    %c0_4 = arith.constant 0 : index
    %c0_5 = arith.constant 0 : index
    %4 = vector.load %arg3[%c0_4, %c0_5] : memref<1x128xf32, #tpu.memory_space<vmem>>, vector<1x128xf32>
    %5 = vector.broadcast %4 : vector<1x128xf32> to vector<4x128xf32>
    %6 = arith.addf %3, %5 : vector<4x128xf32>
    %cst_6 = arith.constant 0.000000e+00 : f32
    %7 = vector.broadcast %cst_6 : f32 to vector<4x128xf32>
    %8 = arith.maximumf %6, %7 : vector<4x128xf32>
    %cst_7 = arith.constant dense<0.000000e+00> : vector<128xf32>
    %9 = vector.multi_reduction <add>, %8, %cst_7 [0] : vector<4x128xf32> to vector<128xf32>
    %10 = vector.shape_cast %9 : vector<128xf32> to vector<1x128xf32>
    %cst_8 = arith.constant 4.000000e+00 : f32
    %11 = vector.broadcast %cst_8 : f32 to vector<1x128xf32>
    %12 = arith.divf %10, %11 : vector<1x128xf32>
    %c0_9 = arith.constant 0 : index
    %c0_10 = arith.constant 0 : index
    %c0_11 = arith.constant 0 : index
    %13 = vector.load %arg4[%c0_9, %c0_10, %c0_11] : memref<1x1x128xf32, #tpu.memory_space<vmem>>, vector<1x1x128xf32>
    %14 = vector.shape_cast %13 : vector<1x1x128xf32> to vector<1x128xf32>
    %15 = vector.shape_cast %12 : vector<1x128xf32> to vector<1x1x128xf32>
    tpu.vector_store %arg4[%c0_9, %c0_10, %c0_11], %15 {strides = array<i32>} : memref<1x1x128xf32, #tpu.memory_space<vmem>>, vector<1x1x128xf32>,
    return
  }
  func.func @transform_0(%arg0: i32) -> (i32, i32, i32) {
    %c0_i32 = arith.constant 0 : i32
    %c0_i32_0 = arith.constant 0 : i32
    %c0_i32_1 = arith.constant 0 : i32
    return %arg0, %c0_i32, %c0_i32_0 : i32, i32, i32
  }
  func.func @transform_1(%arg0: i32) -> (i32, i32) {
    %c0_i32 = arith.constant 0 : i32
    %c0_i32_0 = arith.constant 0 : i32
    %c0_i32_1 = arith.constant 0 : i32
    return %c0_i32, %c0_i32_0 : i32, i32
  }
  func.func @transform_2(%arg0: i32) -> (i32, i32) {
    %c0_i32 = arith.constant 0 : i32
    %c0_i32_0 = arith.constant 0 : i32
    %c0_i32_1 = arith.constant 0 : i32
    return %c0_i32, %c0_i32_0 : i32, i32
  }
  func.func @transform_3(%arg0: i32) -> (i32, i32, i32) {
    %c0_i32 = arith.constant 0 : i32
    %c0_i32_0 = arith.constant 0 : i32
    %c0_i32_1 = arith.constant 0 : i32
    return %arg0, %c0_i32, %c0_i32_0 : i32, i32, i32
  }
}

</mosaic_0001>

<llo_original>
// kernel: condition_net_forward.3
$region0: #{condition_net_forward.3}
  #allocation0 [shape = 'u32[]', space=smem, size = 0x4, offset = 0x4, fixed_abs, tag = 'smem constant byte address 0x4 - core index']
  #allocation1 [shape = 'u32[72,128]{1,0:T(1,128)}', space=vmem, size = 0x9000, scoped, tag = 'internal scratch']
  %s0 = inlined_call_operand.vmem [shape: bf16[72,256], index: 0, kind: input, shape index: {}]
  %s1 = inlined_call_operand.vmem [shape: bf16[256,128], index: 1, kind: input, shape index: {}]
  %s2 = inlined_call_operand.vmem [shape: f32[1,128], index: 2, kind: input, shape index: {}]
  %s3 = inlined_call_operand.vmem [shape: bf16[72,128], index: 3, kind: output, shape index: {}]
  %s4 = sld [smem:[#allocation0]]
  $region59: #{condition_net_forward.3} parent=0
    _
  %s6 = ssub.s32 1, %s4
  %s7 = scalar_select 0, %s6, %s4
  $region1: #{condition_net_forward.3} parent=0
    #allocation2 [shape = 'u8[20480]{0}', space=vmem, size = 0x5000, scoped, tag = 'output window, operand 0, single buffered']
    // Predicated region
    $region2: #{condition_net_forward.3} parent=1 // pred_check
      _
    $region3: #{condition_net_forward.3} parent=1 // pred_check_branch
      %9 = sbr.rel (0) target = $region5
    $region4: #{condition_net_forward.3} parent=1 // pred_region
      _
    $region5: #{condition_net_forward.3} parent=1 // pred_fallthru
      _
    // Predicated region
    $region6: #{condition_net_forward.3} parent=1 // pred_check
      _
    $region7: #{condition_net_forward.3} parent=1 // pred_check_branch
      %11 = sbr.rel (0) target = $region9
    $region8: #{condition_net_forward.3} parent=1 // pred_region
      _
    $region9: #{condition_net_forward.3} parent=1 // pred_fallthru
      _
    // Predicated region
    $region10: #{condition_net_forward.3} parent=1 // pred_check
      _
    $region11: #{condition_net_forward.3} parent=1 // pred_check_branch
      %13 = sbr.rel (0) target = $region13
    $region12: #{condition_net_forward.3} parent=1 // pred_region
      _
    $region13: #{condition_net_forward.3} parent=1 // pred_fallthru
      _
    %v14 = vld [vmem:[%s0] sm:$0xff]
    %v15 = vld [vmem:[%s0 + $0x8] sm:$0xff]
    %v16 = vld [vmem:[%s0 + $0x10] sm:$0xff]
    %v17 = vld [vmem:[%s0 + $0x18] sm:$0xff]
    %v18 = vld [vmem:[%s0 + $0x20] sm:$0xff]
    %v19 = vld [vmem:[%s0 + $0x28] sm:$0xff]
    %v20 = vld [vmem:[%s0 + $0x30] sm:$0xff]
    %v21 = vld [vmem:[%s0 + $0x38] sm:$0xff]
    %v22 = vld [vmem:[%s0 + $0x40] sm:$0xff]
    %v23 = vld [vmem:[%s0 + $0x48] sm:$0xff]
    %v24 = vld [vmem:[%s1] sm:$0xf]
    %v25 = vld [vmem:[%s1 + $0x4] sm:$0xf]
    %v26 = vld [vmem:[%s1 + $0x8] sm:$0xf]
    %v27 = vld [vmem:[%s1 + $0xc] sm:$0xf]
    %v28 = vld [vmem:[%s1 + $0x10] sm:$0xf]
    %v29 = vld [vmem:[%s1 + $0x14] sm:$0xf]
    %v30 = vld [vmem:[%s1 + $0x18] sm:$0xf]
    %v31 = vld [vmem:[%s1 + $0x1c] sm:$0xf]
    %v32 = vld [vmem:[%s1 + $0x20] sm:$0xf]
    %v33 = vld [vmem:[%s1 + $0x24] sm:$0xf]
    %v34 = vld [vmem:[%s1 + $0x28] sm:$0xf]
    %v35 = vld [vmem:[%s1 + $0x2c] sm:$0xf]
    %v36 = vld [vmem:[%s1 + $0x30] sm:$0xf]
    %v37 = vld [vmem:[%s1 + $0x34] sm:$0xf]
    %v38 = vld [vmem:[%s1 + $0x38] sm:$0xf]
    %v39 = vld [vmem:[%s1 + $0x3c] sm:$0xf]
    %v40 = vld [vmem:[%s1 + $0x40] sm:$0xf]
    %v41 = vld [vmem:[%s1 + $0x44] sm:$0xf]
    %v42 = vld [vmem:[%s1 + $0x48] sm:$0xf]
    %v43 = vld [vmem:[%s1 + $0x4c] sm:$0xf]
    %v44 = vld [vmem:[%s1 + $0x50] sm:$0xf]
    %v45 = vld [vmem:[%s1 + $0x54] sm:$0xf]
    %v46 = vld [vmem:[%s1 + $0x58] sm:$0xf]
    %v47 = vld [vmem:[%s1 + $0x5c] sm:$0xf]
    %v48 = vld [vmem:[%s1 + $0x60] sm:$0xf]
    %v49 = vld [vmem:[%s1 + $0x64] sm:$0xf]
    %v50 = vld [vmem:[%s1 + $0x68] sm:$0xf]
    %v51 = vld [vmem:[%s1 + $0x6c] sm:$0xf]
    %v52 = vld [vmem:[%s1 + $0x70] sm:$0xf]
    %v53 = vld [vmem:[%s1 + $0x74] sm:$0xf]
    %v54 = vld [vmem:[%s1 + $0x78] sm:$0xf]
    %v55 = vld [vmem:[%s1 + $0x7c] sm:$0xf]
    %v56 = vld [vmem:[%s2] sm:$0x1]
    %v58 = vperm.slane %v56, 0
    %v70 = vunpack.c.l.b16 %v14
    %v71 = vunpack.c.h.b16 %v14
    %v72 = vunpack.c.l.b16 %v15
    %v73 = vunpack.c.h.b16 %v15
    %v74 = vunpack.c.l.b16 %v16
    %v75 = vunpack.c.h.b16 %v16
    %v76 = vunpack.c.l.b16 %v17
    %v77 = vunpack.c.h.b16 %v17
    %v78 = vunpack.c.l.b16 %v18
    %v79 = vunpack.c.h.b16 %v18
    %v80 = vunpack.c.l.b16 %v19
    %v81 = vunpack.c.h.b16 %v19
    %v82 = vunpack.c.l.b16 %v20
    %v83 = vunpack.c.h.b16 %v20
    %v84 = vunpack.c.l.b16 %v21
    %v85 = vunpack.c.h.b16 %v21
    %v86 = vunpack.c.l.b16 %v22
    %v87 = vunpack.c.h.b16 %v22
    %v88 = vunpack.c.l.b16 %v23
    %v89 = vunpack.c.h.b16 %v23
    %v90 = vpack.c.b16 %v72, %v70
    %v91 = vpack.c.b16 %v73, %v71
    %v92 = vpack.c.b16 %v76, %v74
    %v93 = vpack.c.b16 %v77, %v75
    %v94 = vpack.c.b16 %v80, %v78
    %v95 = vpack.c.b16 %v81, %v79
    %v96 = vpack.c.b16 %v84, %v82
    %v97 = vpack.c.b16 %v85, %v83
    %v98 = vpack.c.b16 %v88, %v86
    %v99 = vpack.c.b16 %v89, %v87
    %v142 = vunpack.c.l.b16 %v24
    %v143 = vunpack.c.l.b16 %v25
    %v144 = vunpack.c.l.b16 %v26
    %v145 = vunpack.c.l.b16 %v27
    %v146 = vunpack.c.l.b16 %v28
    %v147 = vunpack.c.l.b16 %v29
    %v148 = vunpack.c.l.b16 %v30
    %v149 = vunpack.c.l.b16 %v31
    %v150 = vunpack.c.l.b16 %v32
    %v151 = vunpack.c.l.b16 %v33
    %v152 = vunpack.c.l.b16 %v34
    %v153 = vunpack.c.l.b16 %v35
    %v154 = vunpack.c.l.b16 %v36
    %v155 = vunpack.c.l.b16 %v37
    %v156 = vunpack.c.l.b16 %v38
    %v157 = vunpack.c.l.b16 %v39
    %v158 = vunpack.c.l.b16 %v40
    %v159 = vunpack.c.l.b16 %v41
    %v160 = vunpack.c.l.b16 %v42
    %v161 = vunpack.c.l.b16 %v43
    %v162 = vunpack.c.l.b16 %v44
    %v163 = vunpack.c.l.b16 %v45
    %v164 = vunpack.c.l.b16 %v46
    %v165 = vunpack.c.l.b16 %v47
    %v166 = vunpack.c.l.b16 %v48
    %v167 = vunpack.c.l.b16 %v49
    %v168 = vunpack.c.l.b16 %v50
    %v169 = vunpack.c.l.b16 %v51
    %v170 = vunpack.c.l.b16 %v52
    %v171 = vunpack.c.l.b16 %v53
    %v172 = vunpack.c.l.b16 %v54
    %v173 = vunpack.c.l.b16 %v55
    %v174 = vpack.c.b16 %v143, %v142
    %v175 = vpack.c.b16 %v145, %v144
    %v176 = vpack.c.b16 %v147, %v146
    %v177 = vpack.c.b16 %v149, %v148
    %v178 = vpack.c.b16 %v151, %v150
    %v179 = vpack.c.b16 %v153, %v152
    %v180 = vpack.c.b16 %v155, %v154
    %v181 = vpack.c.b16 %v157, %v156
    %v182 = vpack.c.b16 %v159, %v158
    %v183 = vpack.c.b16 %v161, %v160
    %v184 = vpack.c.b16 %v163, %v162
    %v185 = vpack.c.b16 %v165, %v164
    %v186 = vpack.c.b16 %v167, %v166
    %v187 = vpack.c.b16 %v169, %v168
    %v188 = vpack.c.b16 %v171, %v170
    %v189 = vpack.c.b16 %v173, %v172
    %206 = vmatpush.bf16.msra.mxu0 %v181
    %207 = vmatpush.bf16.msra.mxu0 %v180
    %208 = vmatpush.bf16.msra.mxu0 %v179
    %209 = vmatpush.bf16.msra.mxu0 %v178
    %210 = vmatpush.bf16.msra.mxu0 %v177
    %211 = vmatpush.bf16.msra.mxu0 %v176
    %212 = vmatpush.bf16.msra.mxu0 %v175
    %213 = vmatpush.bf16.msra.mxu0 %v174
    %214 = vmatmul.bf16.gmra.mxu0 %v90
    %v215 = vpop.f32.mrf.mxu0
    %v216 = vadd.f32 %v58, %v215
    %v217 = vpop.f32.mrf.mxu0
    %v218 = vadd.f32 %v58, %v217
    %219 = vmatmul.bf16.gmra.mxu0 %v92
    %v220 = vpop.f32.mrf.mxu0
    %v221 = vadd.f32 %v58, %v220
    %v222 = vpop.f32.mrf.mxu0
    %v223 = vadd.f32 %v58, %v222
    %224 = vmatmul.bf16.gmra.mxu0 %v94
    %v225 = vpop.f32.mrf.mxu0
    %v226 = vadd.f32 %v58, %v225
    %v227 = vpop.f32.mrf.mxu0
    %v228 = vadd.f32 %v58, %v227
    %229 = vmatmul.bf16.gmra.mxu0 %v96
    %v230 = vpop.f32.mrf.mxu0
    %v231 = vadd.f32 %v58, %v230
    %v232 = vpop.f32.mrf.mxu0
    %v233 = vadd.f32 %v58, %v232
    %234 = vmatmul.bf16.gmra.mxu0 %v98
    %v235 = vpop.f32.mrf.mxu0
    %v236 = vadd.f32 %v58, %v235
    %v237 = vpop.f32.mrf.mxu0
    %v238 = vadd.f32 %v58, %v237
    %239 = vdwg.mxu0
    %240 = vmatpush.bf16.msra.mxu0 %v189
    %241 = vmatpush.bf16.msra.mxu0 %v188
    %242 = vmatpush.bf16.msra.mxu0 %v187
    %243 = vmatpush.bf16.msra.mxu0 %v186
    %244 = vmatpush.bf16.msra.mxu0 %v185
    %245 = vmatpush.bf16.msra.mxu0 %v184
    %246 = vmatpush.bf16.msra.mxu0 %v183
    %247 = vmatpush.bf16.msra.mxu0 %v182
    %248 = vmatmul.bf16.gmra.mxu0 %v91
    %v249 = vpop.f32.mrf.mxu0
    %v250 = vadd.f32 %v216, %v249
    %v251 = vpop.f32.mrf.mxu0
    %v252 = vadd.f32 %v218, %v251
    %253 = vmatmul.bf16.gmra.mxu0 %v93
    %v254 = vpop.f32.mrf.mxu0
    %v255 = vadd.f32 %v221, %v254
    %v256 = vpop.f32.mrf.mxu0
    %v257 = vadd.f32 %v223, %v256
    %258 = vmatmul.bf16.gmra.mxu0 %v95
    %v259 = vpop.f32.mrf.mxu0
    %v260 = vadd.f32 %v226, %v259
    %v261 = vpop.f32.mrf.mxu0
    %v262 = vadd.f32 %v228, %v261
    %263 = vmatmul.bf16.gmra.mxu0 %v97
    %v264 = vpop.f32.mrf.mxu0
    %v265 = vadd.f32 %v231, %v264
    %v266 = vpop.f32.mrf.mxu0
    %v267 = vadd.f32 %v233, %v266
    %268 = vmatmul.bf16.gmra.mxu0 %v99
    %v269 = vpop.f32.mrf.mxu0
    %v270 = vadd.f32 %v236, %v269
    %v271 = vpop.f32.mrf.mxu0
    %v272 = vadd.f32 %v238, %v271
    %273 = vdwg.mxu0
    %v274 = vmax.f32 %v250, 0.0
    %v275 = vmax.f32 %v252, 0.0
    %v276 = vmax.f32 %v255, 0.0
    %v277 = vmax.f32 %v257, 0.0
    %v278 = vmax.f32 %v260, 0.0
    %v279 = vmax.f32 %v262, 0.0
    %v280 = vmax.f32 %v265, 0.0
    %v281 = vmax.f32 %v267, 0.0
    %v282 = vmax.f32 %v270, 0.0
    %v283 = vmax.f32 %v272, 0.0
    %v284 = vpack.c.bf16 %v274, %v274
    %v285 = vpack.c.bf16 %v275, %v275
    %v286 = vpack.c.bf16 %v276, %v276
    %v287 = vpack.c.bf16 %v277, %v277
    %v288 = vpack.c.bf16 %v278, %v278
    %v289 = vpack.c.bf16 %v279, %v279
    %v290 = vpack.c.bf16 %v280, %v280
    %v291 = vpack.c.bf16 %v281, %v281
    %v292 = vpack.c.bf16 %v282, %v282
    %v293 = vpack.c.bf16 %v283, %v283
    %294 = vst [vmem:[#allocation2] sm:$0xf] %v284
    %295 = vst [vmem:[#allocation2 + $0x4] sm:$0xf] %v285
    %296 = vst [vmem:[#allocation2 + $0x8] sm:$0xf] %v286
    %297 = vst [vmem:[#allocation2 + $0xc] sm:$0xf] %v287
    %298 = vst [vmem:[#allocation2 + $0x10] sm:$0xf] %v288
    %299 = vst [vmem:[#allocation2 + $0x14] sm:$0xf] %v289
    %300 = vst [vmem:[#allocation2 + $0x18] sm:$0xf] %v290
    %301 = vst [vmem:[#allocation2 + $0x1c] sm:$0xf] %v291
    %302 = vst [vmem:[#allocation2 + $0x20] sm:$0xf] %v292
    %303 = vst [vmem:[#allocation2 + $0x24] sm:$0xf] %v293
    // Predicated region
    $region14: #{condition_net_forward.3} parent=1 // pred_check
      _
    $region15: #{condition_net_forward.3} parent=1 // pred_check_branch
      %305 = sbr.rel (0) target = $region17
    $region16: #{condition_net_forward.3} parent=1 // pred_region
      // Predicated region
      $region18: #{condition_net_forward.3} parent=16 // pred_check
        _
      $region19: #{condition_net_forward.3} parent=16 // pred_check_branch
        %307 = sbr.rel (0) target = $region21
      $region20: #{condition_net_forward.3} parent=16 // pred_region
        // Predicated region
        $region22: #{condition_net_forward.3} parent=20 // pred_check
          _
        $region23: #{condition_net_forward.3} parent=20 // pred_check_branch
          %309 = sbr.rel target = $region25
        $region24: #{condition_net_forward.3} parent=20 // pred_region
          // Predicated region
          $region37: #{condition_net_forward.3} parent=24 // pred_check
            _
          $region38: #{condition_net_forward.3} parent=24 // pred_check_branch
            %341 = sbr.rel (0) target = $region40
          $region39: #{condition_net_forward.3} parent=24 // pred_region
            loop: start=0, step=1, limit=1
            $region41: #{condition_net_forward.3} parent=39 // loop_pre_header
              _
            $region42: #{condition_net_forward.3} parent=39 // loop_header
              %s343 = sphi 0, %s347
              %p344 = scmp.ge.s32.totalorder %s343, 1
              %s348 = sphi [#allocation2], [#allocation2]
              %s349 = sphi %s3, %s3
            $region43: #{condition_net_forward.3} parent=39 // loop_header_branch
              %346 = sbr.rel (%p344) target = $region47
            $region44: #{condition_net_forward.3} parent=39 // loop_body
              _
            $region45: #{condition_net_forward.3} parent=39 // loop_footer
              %s347 = sadd.s32 1, %s343
            $region46: #{condition_net_forward.3} parent=39 // loop_footer_branch
              %342 = sbr.rel target = $region42
            $region47: #{condition_net_forward.3} parent=39 // loop_exit
              _
            %s351 = ssub.s32 16, 1
            loop: start=0, step=1, limit=1
            $region48: #{condition_net_forward.3} parent=39 // loop_pre_header
              _
            $region49: #{condition_net_forward.3} parent=39 // loop_header
              %s353 = sphi 0, %s357
              %p354 = scmp.ge.s32.totalorder %s353, 1
              %s358 = sphi [#allocation2], [#allocation2]
              %s359 = sphi %s3, %s3
            $region50: #{condition_net_forward.3} parent=39 // loop_header_branch
              %356 = sbr.rel (%p354) target = $region54
            $region51: #{condition_net_forward.3} parent=39 // loop_body
              %v360 = vld [vmem:[%s358] sm:%s351]
              %361 = vst [vmem:[%s359] sm:%s351] %v360
              %v362 = vld [vmem:[%s358 + $0x4] sm:%s351]
              %363 = vst [vmem:[%s359 + $0x4] sm:%s351] %v362
              %v364 = vld [vmem:[%s358 + $0x8] sm:%s351]
              %365 = vst [vmem:[%s359 + $0x8] sm:%s351] %v364
              %v366 = vld [vmem:[%s358 + $0xc] sm:%s351]
              %367 = vst [vmem:[%s359 + $0xc] sm:%s351] %v366
              %v368 = vld [vmem:[%s358 + $0x10] sm:%s351]
              %369 = vst [vmem:[%s359 + $0x10] sm:%s351] %v368
              %v370 = vld [vmem:[%s358 + $0x14] sm:%s351]
              %371 = vst [vmem:[%s359 + $0x14] sm:%s351] %v370
              %v372 = vld [vmem:[%s358 + $0x18] sm:%s351]
              %373 = vst [vmem:[%s359 + $0x18] sm:%s351] %v372
              %v374 = vld [vmem:[%s358 + $0x1c] sm:%s351]
              %375 = vst [vmem:[%s359 + $0x1c] sm:%s351] %v374
              %v376 = vld [vmem:[%s358 + $0x20] sm:%s351]
              %377 = vst [vmem:[%s359 + $0x20] sm:%s351] %v376
            $region52: #{condition_net_forward.3} parent=39 // loop_footer
              %s357 = sadd.s32 1, %s353
            $region53: #{condition_net_forward.3} parent=39 // loop_footer_branch
              %352 = sbr.rel target = $region49
            $region54: #{condition_net_forward.3} parent=39 // loop_exit
              _
          $region40: #{condition_net_forward.3} parent=24 // pred_fallthru
            _
        $region25: #{condition_net_forward.3} parent=20 // pred_fallthru
          _
        // Predicated region
        $region26: #{condition_net_forward.3} parent=20 // pred_check
          _
        $region27: #{condition_net_forward.3} parent=20 // pred_check_branch
          %311 = sbr.rel (0) target = $region29
        $region28: #{condition_net_forward.3} parent=20 // pred_region
          %s313 = ssub.s32 16, 1
          loop: start=0, step=1, limit=1
          $region30: #{condition_net_forward.3} parent=28 // loop_pre_header
            _
          $region31: #{condition_net_forward.3} parent=28 // loop_header
            %s315 = sphi 0, %s319
            %p316 = scmp.ge.s32.totalorder %s315, 1
            %s320 = sphi [#allocation2], [#allocation2]
            %s321 = sphi %s3, %s3
          $region32: #{condition_net_forward.3} parent=28 // loop_header_branch
            %318 = sbr.rel (%p316) target = $region36
          $region33: #{condition_net_forward.3} parent=28 // loop_body
            %v322 = vld [vmem:[%s320] sm:%s313]
            %323 = vst [vmem:[%s321] sm:%s313] %v322
            %v324 = vld [vmem:[%s320 + $0x4] sm:%s313]
            %325 = vst [vmem:[%s321 + $0x4] sm:%s313] %v324
            %v326 = vld [vmem:[%s320 + $0x8] sm:%s313]
            %327 = vst [vmem:[%s321 + $0x8] sm:%s313] %v326
            %v328 = vld [vmem:[%s320 + $0xc] sm:%s313]
            %329 = vst [vmem:[%s321 + $0xc] sm:%s313] %v328
            %v330 = vld [vmem:[%s320 + $0x10] sm:%s313]
            %331 = vst [vmem:[%s321 + $0x10] sm:%s313] %v330
            %v332 = vld [vmem:[%s320 + $0x14] sm:%s313]
            %333 = vst [vmem:[%s321 + $0x14] sm:%s313] %v332
            %v334 = vld [vmem:[%s320 + $0x18] sm:%s313]
            %335 = vst [vmem:[%s321 + $0x18] sm:%s313] %v334
            %v336 = vld [vmem:[%s320 + $0x1c] sm:%s313]
            %337 = vst [vmem:[%s321 + $0x1c] sm:%s313] %v336
            %v338 = vld [vmem:[%s320 + $0x20] sm:%s313]
            %339 = vst [vmem:[%s321 + $0x20] sm:%s313] %v338
          $region34: #{condition_net_forward.3} parent=28 // loop_footer
            %s319 = sadd.s32 1, %s315
          $region35: #{condition_net_forward.3} parent=28 // loop_footer_branch
            %314 = sbr.rel target = $region31
          $region36: #{condition_net_forward.3} parent=28 // loop_exit
            _
        $region29: #{condition_net_forward.3} parent=20 // pred_fallthru
          _
      $region21: #{condition_net_forward.3} parent=16 // pred_fallthru
        _
      %378 = vnop
    $region17: #{condition_net_forward.3} parent=1 // pred_fallthru
      _
    // Predicated region
    $region55: #{condition_net_forward.3} parent=1 // pred_check
      _
    $region56: #{condition_net_forward.3} parent=1 // pred_check_branch
      %380 = sbr.rel (0) target = $region58
    $region57: #{condition_net_forward.3} parent=1 // pred_region
      _
    $region58: #{condition_net_forward.3} parent=1 // pred_fallthru
      _

// kernel: condition_net_forward.4
$region0: #{condition_net_forward.4}
  #allocation0 [shape = 'u32[]', space=smem, size = 0x4, offset = 0x4, fixed_abs, tag = 'smem constant byte address 0x4 - core index']
  #allocation1 [shape = 'u32[72,128]{1,0:T(1,128)}', space=vmem, size = 0x9000, scoped, tag = 'internal scratch']
  %s0 = inlined_call_operand.vmem [shape: bf16[18,384], index: 0, kind: input, shape index: {}]
  %s1 = inlined_call_operand.vmem [shape: bf16[384,128], index: 1, kind: input, shape index: {}]
  %s2 = inlined_call_operand.vmem [shape: f32[1,128], index: 2, kind: input, shape index: {}]
  %s3 = inlined_call_operand.vmem [shape: bf16[18,128], index: 3, kind: output, shape index: {}]
  %s4 = sld [smem:[#allocation0]]
  $region59: #{condition_net_forward.4} parent=0
    _
  %s6 = ssub.s32 1, %s4
  %s7 = scalar_select 0, %s6, %s4
  $region1: #{condition_net_forward.4} parent=0
    #allocation2 [shape = 'u8[8192]{0}', space=vmem, size = 0x2000, scoped, tag = 'output window, operand 0, single buffered']
    // Predicated region
    $region2: #{condition_net_forward.4} parent=1 // pred_check
      _
    $region3: #{condition_net_forward.4} parent=1 // pred_check_branch
      %9 = sbr.rel (0) target = $region5
    $region4: #{condition_net_forward.4} parent=1 // pred_region
      _
    $region5: #{condition_net_forward.4} parent=1 // pred_fallthru
      _
    // Predicated region
    $region6: #{condition_net_forward.4} parent=1 // pred_check
      _
    $region7: #{condition_net_forward.4} parent=1 // pred_check_branch
      %11 = sbr.rel (0) target = $region9
    $region8: #{condition_net_forward.4} parent=1 // pred_region
      _
    $region9: #{condition_net_forward.4} parent=1 // pred_fallthru
      _
    // Predicated region
    $region10: #{condition_net_forward.4} parent=1 // pred_check
      _
    $region11: #{condition_net_forward.4} parent=1 // pred_check_branch
      %13 = sbr.rel (0) target = $region13
    $region12: #{condition_net_forward.4} parent=1 // pred_region
      _
    $region13: #{condition_net_forward.4} parent=1 // pred_fallthru
      _
    %v14 = vld [vmem:[%s0] sm:$0xff]
    %v15 = vld [vmem:[%s0 + $0x8] sm:$0xf]
    %v16 = vld [vmem:[%s0 + $0xc] sm:$0xff]
    %v17 = vld [vmem:[%s0 + $0x14] sm:$0xf]
    %v18 = vld [vmem:[%s0 + $0x18] sm:$0xff]
    %v19 = vld [vmem:[%s0 + $0x20] sm:$0xf]
    %v20 = vld [vmem:[%s0 + $0x24] sm:$0xff]
    %v21 = vld [vmem:[%s0 + $0x2c] sm:$0xf]
    %v22 = vld [vmem:[%s1] sm:$0xf]
    %v23 = vld [vmem:[%s1 + $0x4] sm:$0xf]
    %v24 = vld [vmem:[%s1 + $0x8] sm:$0xf]
    %v25 = vld [vmem:[%s1 + $0xc] sm:$0xf]
    %v26 = vld [vmem:[%s1 + $0x10] sm:$0xf]
    %v27 = vld [vmem:[%s1 + $0x14] sm:$0xf]
    %v28 = vld [vmem:[%s1 + $0x18] sm:$0xf]
    %v29 = vld [vmem:[%s1 + $0x1c] sm:$0xf]
    %v30 = vld [vmem:[%s1 + $0x20] sm:$0xf]
    %v31 = vld [vmem:[%s1 + $0x24] sm:$0xf]
    %v32 = vld [vmem:[%s1 + $0x28] sm:$0xf]
    %v33 = vld [vmem:[%s1 + $0x2c] sm:$0xf]
    %v34 = vld [vmem:[%s1 + $0x30] sm:$0xf]
    %v35 = vld [vmem:[%s1 + $0x34] sm:$0xf]
    %v36 = vld [vmem:[%s1 + $0x38] sm:$0xf]
    %v37 = vld [vmem:[%s1 + $0x3c] sm:$0xf]
    %v38 = vld [vmem:[%s1 + $0x40] sm:$0xf]
    %v39 = vld [vmem:[%s1 + $0x44] sm:$0xf]
    %v40 = vld [vmem:[%s1 + $0x48] sm:$0xf]
    %v41 = vld [vmem:[%s1 + $0x4c] sm:$0xf]
    %v42 = vld [vmem:[%s1 + $0x50] sm:$0xf]
    %v43 = vld [vmem:[%s1 + $0x54] sm:$0xf]
    %v44 = vld [vmem:[%s1 + $0x58] sm:$0xf]
    %v45 = vld [vmem:[%s1 + $0x5c] sm:$0xf]
    %v46 = vld [vmem:[%s1 + $0x60] sm:$0xf]
    %v47 = vld [vmem:[%s1 + $0x64] sm:$0xf]
    %v48 = vld [vmem:[%s1 + $0x68] sm:$0xf]
    %v49 = vld [vmem:[%s1 + $0x6c] sm:$0xf]
    %v50 = vld [vmem:[%s1 + $0x70] sm:$0xf]
    %v51 = vld [vmem:[%s1 + $0x74] sm:$0xf]
    %v52 = vld [vmem:[%s1 + $0x78] sm:$0xf]
    %v53 = vld [vmem:[%s1 + $0x7c] sm:$0xf]
    %v54 = vld [vmem:[%s1 + $0x80] sm:$0xf]
    %v55 = vld [vmem:[%s1 + $0x84] sm:$0xf]
    %v56 = vld [vmem:[%s1 + $0x88] sm:$0xf]
    %v57 = vld [vmem:[%s1 + $0x8c] sm:$0xf]
    %v58 = vld [vmem:[%s1 + $0x90] sm:$0xf]
    %v59 = vld [vmem:[%s1 + $0x94] sm:$0xf]
    %v60 = vld [vmem:[%s1 + $0x98] sm:$0xf]
    %v61 = vld [vmem:[%s1 + $0x9c] sm:$0xf]
    %v62 = vld [vmem:[%s1 + $0xa0] sm:$0xf]
    %v63 = vld [vmem:[%s1 + $0xa4] sm:$0xf]
    %v64 = vld [vmem:[%s1 + $0xa8] sm:$0xf]
    %v65 = vld [vmem:[%s1 + $0xac] sm:$0xf]
    %v66 = vld [vmem:[%s1 + $0xb0] sm:$0xf]
    %v67 = vld [vmem:[%s1 + $0xb4] sm:$0xf]
    %v68 = vld [vmem:[%s1 + $0xb8] sm:$0xf]
    %v69 = vld [vmem:[%s1 + $0xbc] sm:$0xf]
    %v70 = vld [vmem:[%s2] sm:$0x1]
    %v72 = vperm.slane %v70, 0
    %v82 = vunpack.c.l.b16 %v14
    %v83 = vunpack.c.h.b16 %v14
    %v84 = vunpack.c.l.b16 %v15
    %v85 = vunpack.c.l.b16 %v16
    %v86 = vunpack.c.h.b16 %v16
    %v87 = vunpack.c.l.b16 %v17
    %v88 = vunpack.c.l.b16 %v18
    %v89 = vunpack.c.h.b16 %v18
    %v90 = vunpack.c.l.b16 %v19
    %v91 = vunpack.c.l.b16 %v20
    %v92 = vunpack.c.h.b16 %v20
    %v93 = vunpack.c.l.b16 %v21
    %v94 = vpack.c.b16 %v85, %v82
    %v95 = vpack.c.b16 %v86, %v83
    %v96 = vpack.c.b16 %v87, %v84
    %v97 = vpack.c.b16 %v91, %v88
    %v98 = vpack.c.b16 %v92, %v89
    %v99 = vpack.c.b16 %v93, %v90
    %v154 = vunpack.c.l.b16 %v22
    %v155 = vunpack.c.l.b16 %v23
    %v156 = vunpack.c.l.b16 %v24
    %v157 = vunpack.c.l.b16 %v25
    %v158 = vunpack.c.l.b16 %v26
    %v159 = vunpack.c.l.b16 %v27
    %v160 = vunpack.c.l.b16 %v28
    %v161 = vunpack.c.l.b16 %v29
    %v162 = vunpack.c.l.b16 %v30
    %v163 = vunpack.c.l.b16 %v31
    %v164 = vunpack.c.l.b16 %v32
    %v165 = vunpack.c.l.b16 %v33
    %v166 = vunpack.c.l.b16 %v34
    %v167 = vunpack.c.l.b16 %v35
    %v168 = vunpack.c.l.b16 %v36
    %v169 = vunpack.c.l.b16 %v37
    %v170 = vunpack.c.l.b16 %v38
    %v171 = vunpack.c.l.b16 %v39
    %v172 = vunpack.c.l.b16 %v40
    %v173 = vunpack.c.l.b16 %v41
    %v174 = vunpack.c.l.b16 %v42
    %v175 = vunpack.c.l.b16 %v43
    %v176 = vunpack.c.l.b16 %v44
    %v177 = vunpack.c.l.b16 %v45
    %v178 = vunpack.c.l.b16 %v46
    %v179 = vunpack.c.l.b16 %v47
    %v180 = vunpack.c.l.b16 %v48
    %v181 = vunpack.c.l.b16 %v49
    %v182 = vunpack.c.l.b16 %v50
    %v183 = vunpack.c.l.b16 %v51
    %v184 = vunpack.c.l.b16 %v52
    %v185 = vunpack.c.l.b16 %v53
    %v186 = vunpack.c.l.b16 %v54
    %v187 = vunpack.c.l.b16 %v55
    %v188 = vunpack.c.l.b16 %v56
    %v189 = vunpack.c.l.b16 %v57
    %v190 = vunpack.c.l.b16 %v58
    %v191 = vunpack.c.l.b16 %v59
    %v192 = vunpack.c.l.b16 %v60
    %v193 = vunpack.c.l.b16 %v61
    %v194 = vunpack.c.l.b16 %v62
    %v195 = vunpack.c.l.b16 %v63
    %v196 = vunpack.c.l.b16 %v64
    %v197 = vunpack.c.l.b16 %v65
    %v198 = vunpack.c.l.b16 %v66
    %v199 = vunpack.c.l.b16 %v67
    %v200 = vunpack.c.l.b16 %v68
    %v201 = vunpack.c.l.b16 %v69
    %v202 = vpack.c.b16 %v155, %v154
    %v203 = vpack.c.b16 %v157, %v156
    %v204 = vpack.c.b16 %v159, %v158
    %v205 = vpack.c.b16 %v161, %v160
    %v206 = vpack.c.b16 %v163, %v162
    %v207 = vpack.c.b16 %v165, %v164
    %v208 = vpack.c.b16 %v167, %v166
    %v209 = vpack.c.b16 %v169, %v168
    %v210 = vpack.c.b16 %v171, %v170
    %v211 = vpack.c.b16 %v173, %v172
    %v212 = vpack.c.b16 %v175, %v174
    %v213 = vpack.c.b16 %v177, %v176
    %v214 = vpack.c.b16 %v179, %v178
    %v215 = vpack.c.b16 %v181, %v180
    %v216 = vpack.c.b16 %v183, %v182
    %v217 = vpack.c.b16 %v185, %v184
    %v218 = vpack.c.b16 %v187, %v186
    %v219 = vpack.c.b16 %v189, %v188
    %v220 = vpack.c.b16 %v191, %v190
    %v221 = vpack.c.b16 %v193, %v192
    %v222 = vpack.c.b16 %v195, %v194
    %v223 = vpack.c.b16 %v197, %v196
    %v224 = vpack.c.b16 %v199, %v198
    %v225 = vpack.c.b16 %v201, %v200
    %250 = vmatpush.bf16.msra.mxu0 %v209
    %251 = vmatpush.bf16.msra.mxu0 %v208
    %252 = vmatpush.bf16.msra.mxu0 %v207
    %253 = vmatpush.bf16.msra.mxu0 %v206
    %254 = vmatpush.bf16.msra.mxu0 %v205
    %255 = vmatpush.bf16.msra.mxu0 %v204
    %256 = vmatpush.bf16.msra.mxu0 %v203
    %257 = vmatpush.bf16.msra.mxu0 %v202
    %258 = vmatmul.bf16.gmra.mxu0 %v94
    %v259 = vpop.f32.mrf.mxu0
    %v260 = vadd.f32 %v72, %v259
    %v261 = vpop.f32.mrf.mxu0
    %v262 = vadd.f32 %v72, %v261
    %263 = vmatmul.bf16.gmra.mxu0 %v97
    %v264 = vpop.f32.mrf.mxu0
    %v265 = vadd.f32 %v72, %v264
    %v266 = vpop.f32.mrf.mxu0
    %v267 = vadd.f32 %v72, %v266
    %268 = vdwg.mxu0
    %269 = vmatpush.bf16.msra.mxu0 %v217
    %270 = vmatpush.bf16.msra.mxu0 %v216
    %271 = vmatpush.bf16.msra.mxu0 %v215
    %272 = vmatpush.bf16.msra.mxu0 %v214
    %273 = vmatpush.bf16.msra.mxu0 %v213
    %274 = vmatpush.bf16.msra.mxu0 %v212
    %275 = vmatpush.bf16.msra.mxu0 %v211
    %276 = vmatpush.bf16.msra.mxu0 %v210
    %277 = vmatmul.bf16.gmra.mxu0 %v95
    %v278 = vpop.f32.mrf.mxu0
    %v279 = vadd.f32 %v260, %v278
    %v280 = vpop.f32.mrf.mxu0
    %v281 = vadd.f32 %v262, %v280
    %282 = vmatmul.bf16.gmra.mxu0 %v98
    %v283 = vpop.f32.mrf.mxu0
    %v284 = vadd.f32 %v265, %v283
    %v285 = vpop.f32.mrf.mxu0
    %v286 = vadd.f32 %v267, %v285
    %287 = vdwg.mxu0
    %288 = vmatpush.bf16.msra.mxu0 %v225
    %289 = vmatpush.bf16.msra.mxu0 %v224
    %290 = vmatpush.bf16.msra.mxu0 %v223
    %291 = vmatpush.bf16.msra.mxu0 %v222
    %292 = vmatpush.bf16.msra.mxu0 %v221
    %293 = vmatpush.bf16.msra.mxu0 %v220
    %294 = vmatpush.bf16.msra.mxu0 %v219
    %295 = vmatpush.bf16.msra.mxu0 %v218
    %296 = vmatmul.bf16.gmra.mxu0 %v96
    %v297 = vpop.f32.mrf.mxu0
    %v298 = vadd.f32 %v279, %v297
    %v299 = vpop.f32.mrf.mxu0
    %v300 = vadd.f32 %v281, %v299
    %301 = vmatmul.bf16.gmra.mxu0 %v99
    %v302 = vpop.f32.mrf.mxu0
    %v303 = vadd.f32 %v284, %v302
    %v304 = vpop.f32.mrf.mxu0
    %v305 = vadd.f32 %v286, %v304
    %306 = vdwg.mxu0
    %v307 = vmax.f32 %v298, 0.0
    %v308 = vmax.f32 %v300, 0.0
    %v309 = vmax.f32 %v303, 0.0
    %v310 = vmax.f32 %v305, 0.0
    %v311 = vpack.c.bf16 %v307, %v307
    %v312 = vpack.c.bf16 %v308, %v308
    %v313 = vpack.c.bf16 %v309, %v309
    %v314 = vpack.c.bf16 %v310, %v310
    %315 = vst [vmem:[#allocation2] sm:$0xf] %v311
    %316 = vst [vmem:[#allocation2 + $0x4] sm:$0xf] %v312
    %317 = vst [vmem:[#allocation2 + $0x8] sm:$0xf] %v313
    %318 = vst [vmem:[#allocation2 + $0xc] sm:$0xf] %v314
    // Predicated region
    $region14: #{condition_net_forward.4} parent=1 // pred_check
      _
    $region15: #{condition_net_forward.4} parent=1 // pred_check_branch
      %320 = sbr.rel (0) target = $region17
    $region16: #{condition_net_forward.4} parent=1 // pred_region
      // Predicated region
      $region18: #{condition_net_forward.4} parent=16 // pred_check
        _
      $region19: #{condition_net_forward.4} parent=16 // pred_check_branch
        %322 = sbr.rel (0) target = $region21
      $region20: #{condition_net_forward.4} parent=16 // pred_region
        // Predicated region
        $region22: #{condition_net_forward.4} parent=20 // pred_check
          _
        $region23: #{condition_net_forward.4} parent=20 // pred_check_branch
          %324 = sbr.rel target = $region25
        $region24: #{condition_net_forward.4} parent=20 // pred_region
          // Predicated region
          $region37: #{condition_net_forward.4} parent=24 // pred_check
            _
          $region38: #{condition_net_forward.4} parent=24 // pred_check_branch
            %344 = sbr.rel (0) target = $region40
          $region39: #{condition_net_forward.4} parent=24 // pred_region
            loop: start=0, step=1, limit=1
            $region41: #{condition_net_forward.4} parent=39 // loop_pre_header
              _
            $region42: #{condition_net_forward.4} parent=39 // loop_header
              %s346 = sphi 0, %s350
              %p347 = scmp.ge.s32.totalorder %s346, 1
              %s351 = sphi [#allocation2], [#allocation2]
              %s352 = sphi %s3, %s3
            $region43: #{condition_net_forward.4} parent=39 // loop_header_branch
              %349 = sbr.rel (%p347) target = $region47
            $region44: #{condition_net_forward.4} parent=39 // loop_body
              _
            $region45: #{condition_net_forward.4} parent=39 // loop_footer
              %s350 = sadd.s32 1, %s346
            $region46: #{condition_net_forward.4} parent=39 // loop_footer_branch
              %345 = sbr.rel target = $region42
            $region47: #{condition_net_forward.4} parent=39 // loop_exit
              _
            %s354 = ssub.s32 16, 1
            loop: start=0, step=1, limit=1
            $region48: #{condition_net_forward.4} parent=39 // loop_pre_header
              _
            $region49: #{condition_net_forward.4} parent=39 // loop_header
              %s356 = sphi 0, %s360
              %p357 = scmp.ge.s32.totalorder %s356, 1
              %s361 = sphi [#allocation2], [#allocation2]
              %s362 = sphi %s3, %s3
            $region50: #{condition_net_forward.4} parent=39 // loop_header_branch
              %359 = sbr.rel (%p357) target = $region54
            $region51: #{condition_net_forward.4} parent=39 // loop_body
              %v363 = vld [vmem:[%s361] sm:%s354]
              %364 = vst [vmem:[%s362] sm:%s354] %v363
              %v365 = vld [vmem:[%s361 + $0x4] sm:%s354]
              %366 = vst [vmem:[%s362 + $0x4] sm:%s354] %v365
              %v367 = vld [vmem:[%s361 + $0x8] sm:%s354]
              %368 = vst [vmem:[%s362 + $0x8] sm:%s354] %v367
            $region52: #{condition_net_forward.4} parent=39 // loop_footer
              %s360 = sadd.s32 1, %s356
            $region53: #{condition_net_forward.4} parent=39 // loop_footer_branch
              %355 = sbr.rel target = $region49
            $region54: #{condition_net_forward.4} parent=39 // loop_exit
              _
          $region40: #{condition_net_forward.4} parent=24 // pred_fallthru
            _
        $region25: #{condition_net_forward.4} parent=20 // pred_fallthru
          _
        // Predicated region
        $region26: #{condition_net_forward.4} parent=20 // pred_check
          _
        $region27: #{condition_net_forward.4} parent=20 // pred_check_branch
          %326 = sbr.rel (0) target = $region29
        $region28: #{condition_net_forward.4} parent=20 // pred_region
          %s328 = ssub.s32 16, 1
          loop: start=0, step=1, limit=1
          $region30: #{condition_net_forward.4} parent=28 // loop_pre_header
            _
          $region31: #{condition_net_forward.4} parent=28 // loop_header
            %s330 = sphi 0, %s334
            %p331 = scmp.ge.s32.totalorder %s330, 1
            %s335 = sphi [#allocation2], [#allocation2]
            %s336 = sphi %s3, %s3
          $region32: #{condition_net_forward.4} parent=28 // loop_header_branch
            %333 = sbr.rel (%p331) target = $region36
          $region33: #{condition_net_forward.4} parent=28 // loop_body
            %v337 = vld [vmem:[%s335] sm:%s328]
            %338 = vst [vmem:[%s336] sm:%s328] %v337
            %v339 = vld [vmem:[%s335 + $0x4] sm:%s328]
            %340 = vst [vmem:[%s336 + $0x4] sm:%s328] %v339
            %v341 = vld [vmem:[%s335 + $0x8] sm:%s328]
            %342 = vst [vmem:[%s336 + $0x8] sm:%s328] %v341
          $region34: #{condition_net_forward.4} parent=28 // loop_footer
            %s334 = sadd.s32 1, %s330
          $region35: #{condition_net_forward.4} parent=28 // loop_footer_branch
            %329 = sbr.rel target = $region31
          $region36: #{condition_net_forward.4} parent=28 // loop_exit
            _
        $region29: #{condition_net_forward.4} parent=20 // pred_fallthru
          _
      $region21: #{condition_net_forward.4} parent=16 // pred_fallthru
        _
      %369 = vnop
    $region17: #{condition_net_forward.4} parent=1 // pred_fallthru
      _
    // Predicated region
    $region55: #{condition_net_forward.4} parent=1 // pred_check
      _
    $region56: #{condition_net_forward.4} parent=1 // pred_check_branch
      %371 = sbr.rel (0) target = $region58
    $region57: #{condition_net_forward.4} parent=1 // pred_region
      _
    $region58: #{condition_net_forward.4} parent=1 // pred_fallthru
      _

// kernel: condition_net_forward.5
$region0: #{condition_net_forward.5}
  #allocation0 [shape = 'u32[]', space=smem, size = 0x4, offset = 0x4, fixed_abs, tag = 'smem constant byte address 0x4 - core index']
  #allocation1 [shape = 'u32[72,128]{1,0:T(1,128)}', space=vmem, size = 0x9000, scoped, tag = 'internal scratch']
  %s0 = inlined_call_operand.vmem [shape: bf16[2,4,384], index: 0, kind: input, shape index: {}]
  %s1 = inlined_call_operand.vmem [shape: bf16[384,128], index: 1, kind: input, shape index: {}]
  %s2 = inlined_call_operand.vmem [shape: f32[1,128], index: 2, kind: input, shape index: {}]
  %s3 = inlined_call_operand.vmem [shape: f32[2,1,128], index: 3, kind: output, shape index: {}]
  %s4 = sld [smem:[#allocation0]]
  $region45: #{condition_net_forward.5} parent=0
    _
  %s6 = ssub.s32 1, %s4
  %s7 = scalar_select 0, %s6, %s4
  loop: start=0, step=1, limit=4
  $region2: #{condition_net_forward.5} parent=0 // loop_pre_header
    _
  $region3: #{condition_net_forward.5} parent=0 // loop_header
    %s9 = sphi 0, %s13
    %p10 = scmp.ge.s32.totalorder %s9, 4
    %s19 = sphi 0, %s21
    %s22 = sphi 0, %s19
    %s23 = sphi 0, %s22
    %s39 = sphi 0, %s23
    %s43 = sphi 0, %s43
    %s45 = sphi 0, %s43
    %s46 = sphi 0, %s45
    %s60 = sphi 0, %s46
    %s64 = sphi 0, %s64
    %s66 = sphi 0, %s64
    %s67 = sphi 0, %s66
    %s81 = sphi 0, %s67
    %s87 = sphi 0, %s89
    %s90 = sphi 0, %s87
    %s91 = sphi 0, %s90
    %s107 = sphi 0, %s91
  $region4: #{condition_net_forward.5} parent=0 // loop_header_branch
    %12 = sbr.rel (%p10) target = $region8
  $region5: #{condition_net_forward.5} parent=0 // loop_body
    %s14 = ssub.s32 %s9, 1
    %s15 = ssub.s32 %s9, 2
    %s16 = sadd.s32 %s9, 1
    %s17 = ssub.s32 %s9, %s16
    %p18 = scmp.eq.s32.totalorder %s17, 0
    %s20 = sadd.s32 %s19, 1
    %s21 = scalar_select %p18, %s19, %s20
    %p24 = pneg %p18
    %p25 = scmp.eq.s32.totalorder %s9, 1
    %p26 = por %p24, %p25
    %p27 = scmp.ne.s32.totalorder %s19, %s22
    %p28 = scmp.eq.s32.totalorder %s9, 0
    %p29 = por %p27, %p28
    %p30 = scmp.ne.s32.totalorder %s19, %s22
    %p31 = scmp.eq.s32.totalorder %s14, 1
    %p32 = por %p30, %p31
    %p33 = scmp.ne.s32.totalorder %s22, %s23
    %p34 = scmp.eq.s32.totalorder %s14, 0
    %p35 = por %p33, %p34
    %p36 = scmp.ne.s32.totalorder %s22, %s23
    %p37 = scmp.eq.s32.totalorder %s15, 1
    %p38 = por %p36, %p37
    %p40 = scmp.ne.s32.totalorder %s23, %s39
    %p41 = scmp.eq.s32.totalorder %s15, 0
    %p42 = por %p40, %p41
    %s44 = sadd.s32 %s43, 1
    %p47 = scmp.eq.s32.totalorder %s9, 1
    %p48 = scmp.ne.s32.totalorder %s43, %s45
    %p49 = scmp.eq.s32.totalorder %s9, 0
    %p50 = por %p48, %p49
    %p51 = scmp.ne.s32.totalorder %s43, %s45
    %p52 = scmp.eq.s32.totalorder %s14, 1
    %p53 = por %p51, %p52
    %p54 = scmp.ne.s32.totalorder %s45, %s46
    %p55 = scmp.eq.s32.totalorder %s14, 0
    %p56 = por %p54, %p55
    %p57 = scmp.ne.s32.totalorder %s45, %s46
    %p58 = scmp.eq.s32.totalorder %s15, 1
    %p59 = por %p57, %p58
    %p61 = scmp.ne.s32.totalorder %s46, %s60
    %p62 = scmp.eq.s32.totalorder %s15, 0
    %p63 = por %p61, %p62
    %s65 = sadd.s32 %s64, 1
    %p68 = scmp.eq.s32.totalorder %s9, 1
    %p69 = scmp.ne.s32.totalorder %s64, %s66
    %p70 = scmp.eq.s32.totalorder %s9, 0
    %p71 = por %p69, %p70
    %p72 = scmp.ne.s32.totalorder %s64, %s66
    %p73 = scmp.eq.s32.totalorder %s14, 1
    %p74 = por %p72, %p73
    %p75 = scmp.ne.s32.totalorder %s66, %s67
    %p76 = scmp.eq.s32.totalorder %s14, 0
    %p77 = por %p75, %p76
    %p78 = scmp.ne.s32.totalorder %s66, %s67
    %p79 = scmp.eq.s32.totalorder %s15, 1
    %p80 = por %p78, %p79
    %p82 = scmp.ne.s32.totalorder %s67, %s81
    %p83 = scmp.eq.s32.totalorder %s15, 0
    %p84 = por %p82, %p83
    %s85 = ssub.s32 %s9, %s16
    %p86 = scmp.eq.s32.totalorder %s85, 0
    %s88 = sadd.s32 %s87, 1
    %s89 = scalar_select %p86, %s87, %s88
    %p92 = pneg %p86
    %p93 = scmp.eq.s32.totalorder %s9, 1
    %p94 = por %p92, %p93
    %p95 = scmp.ne.s32.totalorder %s87, %s90
    %p96 = scmp.eq.s32.totalorder %s9, 0
    %p97 = por %p95, %p96
    %p98 = scmp.ne.s32.totalorder %s87, %s90
    %p99 = scmp.eq.s32.totalorder %s14, 1
    %p100 = por %p98, %p99
    %p101 = scmp.ne.s32.totalorder %s90, %s91
    %p102 = scmp.eq.s32.totalorder %s14, 0
    %p103 = por %p101, %p102
    %p104 = scmp.ne.s32.totalorder %s90, %s91
    %p105 = scmp.eq.s32.totalorder %s15, 1
    %p106 = por %p104, %p105
    %p108 = scmp.ne.s32.totalorder %s91, %s107
    %p109 = scmp.eq.s32.totalorder %s15, 0
    %p110 = por %p108, %p109
    %p111 = scmp.le.s32.totalorder 1, %s9
    %p112 = scmp.lt.s32.totalorder %s9, 3
    %p113 = pnand %p111, %p112
    %p114 = pneg %p113
    // Predicated region
    $region9: #{condition_net_forward.5} parent=5 // pred_check
      _
    $region10: #{condition_net_forward.5} parent=5 // pred_check_branch
      %116 = sbr.rel (%p113) target = $region12
    $region11: #{condition_net_forward.5} parent=5 // pred_region
      %s117 = ssub.s32 %s9, 1
      // Predicated region
      $region13: #{condition_net_forward.5} parent=11 // pred_check
        %p118 = pneg %p56
      $region14: #{condition_net_forward.5} parent=11 // pred_check_branch
        %120 = sbr.rel (%p118) target = $region16
      $region15: #{condition_net_forward.5} parent=11 // pred_region
        _
      $region16: #{condition_net_forward.5} parent=11 // pred_fallthru
        _
      // Predicated region
      $region17: #{condition_net_forward.5} parent=11 // pred_check
        %p121 = pneg %p77
      $region18: #{condition_net_forward.5} parent=11 // pred_check_branch
        %123 = sbr.rel (%p121) target = $region20
      $region19: #{condition_net_forward.5} parent=11 // pred_region
        _
      $region20: #{condition_net_forward.5} parent=11 // pred_fallthru
        _
    $region12: #{condition_net_forward.5} parent=5 // pred_fallthru
      _
    %p124 = scmp.lt.s32.totalorder %s9, 2
    // Predicated region
    $region21: #{condition_net_forward.5} parent=5 // pred_check
      %p125 = pneg %p124
    $region22: #{condition_net_forward.5} parent=5 // pred_check_branch
      %127 = sbr.rel (%p125) target = $region24
    $region23: #{condition_net_forward.5} parent=5 // pred_region
      // Predicated region
      $region25: #{condition_net_forward.5} parent=23 // pred_check
        %p128 = pneg %p29
      $region26: #{condition_net_forward.5} parent=23 // pred_check_branch
        %130 = sbr.rel (%p128) target = $region28
      $region27: #{condition_net_forward.5} parent=23 // pred_region
        %p131 = scmp.lt.s32.totalorder %s9, 1
        %s132 = scalar_select %p131, %s9, 1
        %s133 = smul.addr %s132, 3
        %s134 = smul.addr %s133, 2
        %s135 = scalar_lea.vmem %s0, %s134
      $region28: #{condition_net_forward.5} parent=23 // pred_fallthru
        _
    $region24: #{condition_net_forward.5} parent=5 // pred_fallthru
      _
    %p136 = scmp.le.s32.totalorder 1, %s9
    %p137 = scmp.lt.s32.totalorder %s9, 3
    %p138 = pnand %p136, %p137
    %p139 = pneg %p138
    // Predicated region
    $region29: #{condition_net_forward.5} parent=5 // pred_check
      _
    $region30: #{condition_net_forward.5} parent=5 // pred_check_branch
      %141 = sbr.rel (%p138) target = $region32
    $region31: #{condition_net_forward.5} parent=5 // pred_region
      %s142 = ssub.s32 %s9, 1
      %p143 = scmp.lt.s32.totalorder %s14, 1
      %s144 = scalar_select %p143, %s14, 1
      %s145 = smul.addr %s144, 3
      %s146 = smul.addr %s145, 2
      %s147 = scalar_lea.vmem %s0, %s146
      %p148 = pneg %p35
      %p149 = pneg %p32
      %p150 = pneg %p56
      %p151 = pneg %p53
      %p152 = pneg %p77
      %p153 = pneg %p74
      %p154 = pneg %p103
      %p155 = pneg %p100
      %p156 = scmp.lt.s32.totalorder %s14, 1
      %s157 = scalar_select %p156, %s14, 1
      %s158 = scalar_lea.vmem %s3, %s157
      %p159 = scmp.lt.s32.totalorder %s14, 1
      %s160 = scalar_select %p159, %s14, 1
      %s161 = smul.addr %s160, 3
      %s162 = smul.addr %s161, 2
      %s163 = scalar_lea.vmem %s0, %s162
      %p164 = scmp.lt.s32.totalorder %s14, 1
      %s165 = scalar_select %p164, %s14, 1
      %s166 = scalar_lea.vmem %s3, %s165
      %v167 = vld [vmem:[%s163] sm:$0x3f]
      %v168 = vld [vmem:[%s1] sm:$0xf]
      %v169 = vld [vmem:[%s1 + $0x4] sm:$0xf]
      %v170 = vld [vmem:[%s1 + $0x8] sm:$0xf]
      %v171 = vld [vmem:[%s1 + $0xc] sm:$0xf]
      %v172 = vld [vmem:[%s1 + $0x10] sm:$0xf]
      %v173 = vld [vmem:[%s1 + $0x14] sm:$0xf]
      %v174 = vld [vmem:[%s1 + $0x18] sm:$0xf]
      %v175 = vld [vmem:[%s1 + $0x1c] sm:$0xf]
      %v176 = vld [vmem:[%s1 + $0x20] sm:$0xf]
      %v177 = vld [vmem:[%s1 + $0x24] sm:$0xf]
      %v178 = vld [vmem:[%s1 + $0x28] sm:$0xf]
      %v179 = vld [vmem:[%s1 + $0x2c] sm:$0xf]
      %v180 = vld [vmem:[%s1 + $0x30] sm:$0xf]
      %v181 = vld [vmem:[%s1 + $0x34] sm:$0xf]
      %v182 = vld [vmem:[%s1 + $0x38] sm:$0xf]
      %v183 = vld [vmem:[%s1 + $0x3c] sm:$0xf]
      %v184 = vld [vmem:[%s1 + $0x40] sm:$0xf]
      %v185 = vld [vmem:[%s1 + $0x44] sm:$0xf]
      %v186 = vld [vmem:[%s1 + $0x48] sm:$0xf]
      %v187 = vld [vmem:[%s1 + $0x4c] sm:$0xf]
      %v188 = vld [vmem:[%s1 + $0x50] sm:$0xf]
      %v189 = vld [vmem:[%s1 + $0x54] sm:$0xf]
      %v190 = vld [vmem:[%s1 + $0x58] sm:$0xf]
      %v191 = vld [vmem:[%s1 + $0x5c] sm:$0xf]
      %v192 = vld [vmem:[%s1 + $0x60] sm:$0xf]
      %v193 = vld [vmem:[%s1 + $0x64] sm:$0xf]
      %v194 = vld [vmem:[%s1 + $0x68] sm:$0xf]
      %v195 = vld [vmem:[%s1 + $0x6c] sm:$0xf]
      %v196 = vld [vmem:[%s1 + $0x70] sm:$0xf]
      %v197 = vld [vmem:[%s1 + $0x74] sm:$0xf]
      %v198 = vld [vmem:[%s1 + $0x78] sm:$0xf]
      %v199 = vld [vmem:[%s1 + $0x7c] sm:$0xf]
      %v200 = vld [vmem:[%s1 + $0x80] sm:$0xf]
      %v201 = vld [vmem:[%s1 + $0x84] sm:$0xf]
      %v202 = vld [vmem:[%s1 + $0x88] sm:$0xf]
      %v203 = vld [vmem:[%s1 + $0x8c] sm:$0xf]
      %v204 = vld [vmem:[%s1 + $0x90] sm:$0xf]
      %v205 = vld [vmem:[%s1 + $0x94] sm:$0xf]
      %v206 = vld [vmem:[%s1 + $0x98] sm:$0xf]
      %v207 = vld [vmem:[%s1 + $0x9c] sm:$0xf]
      %v208 = vld [vmem:[%s1 + $0xa0] sm:$0xf]
      %v209 = vld [vmem:[%s1 + $0xa4] sm:$0xf]
      %v210 = vld [vmem:[%s1 + $0xa8] sm:$0xf]
      %v211 = vld [vmem:[%s1 + $0xac] sm:$0xf]
      %v212 = vld [vmem:[%s1 + $0xb0] sm:$0xf]
      %v213 = vld [vmem:[%s1 + $0xb4] sm:$0xf]
      %v214 = vld [vmem:[%s1 + $0xb8] sm:$0xf]
      %v215 = vld [vmem:[%s1 + $0xbc] sm:$0xf]
      %v216 = vld [vmem:[%s2] sm:$0x1]
      %v218 = vperm.slane %v216, 0
      %221 = vst [vmem:[#allocation1] ss:$4 sm:$0xff] %v167
      %v222 = vld.sshfl [vmem:[#allocation1] sm:$0xff pattern:$0x73625140]
      %v223 = vld.sshfl [vmem:[#allocation1 + $0x8] sm:$0xff pattern:$0x73625140]
      %v224 = vld.sshfl [vmem:[#allocation1 + $0x10] sm:$0xff pattern:$0x73625140]
      %v276 = vunpack.c.l.b16 %v168
      %v277 = vunpack.c.l.b16 %v169
      %v278 = vunpack.c.l.b16 %v170
      %v279 = vunpack.c.l.b16 %v171
      %v280 = vunpack.c.l.b16 %v172
      %v281 = vunpack.c.l.b16 %v173
      %v282 = vunpack.c.l.b16 %v174
      %v283 = vunpack.c.l.b16 %v175
      %v284 = vunpack.c.l.b16 %v176
      %v285 = vunpack.c.l.b16 %v177
      %v286 = vunpack.c.l.b16 %v178
      %v287 = vunpack.c.l.b16 %v179
      %v288 = vunpack.c.l.b16 %v180
      %v289 = vunpack.c.l.b16 %v181
      %v290 = vunpack.c.l.b16 %v182
      %v291 = vunpack.c.l.b16 %v183
      %v292 = vunpack.c.l.b16 %v184
      %v293 = vunpack.c.l.b16 %v185
      %v294 = vunpack.c.l.b16 %v186
      %v295 = vunpack.c.l.b16 %v187
      %v296 = vunpack.c.l.b16 %v188
      %v297 = vunpack.c.l.b16 %v189
      %v298 = vunpack.c.l.b16 %v190
      %v299 = vunpack.c.l.b16 %v191
      %v300 = vunpack.c.l.b16 %v192
      %v301 = vunpack.c.l.b16 %v193
      %v302 = vunpack.c.l.b16 %v194
      %v303 = vunpack.c.l.b16 %v195
      %v304 = vunpack.c.l.b16 %v196
      %v305 = vunpack.c.l.b16 %v197
      %v306 = vunpack.c.l.b16 %v198
      %v307 = vunpack.c.l.b16 %v199
      %v308 = vunpack.c.l.b16 %v200
      %v309 = vunpack.c.l.b16 %v201
      %v310 = vunpack.c.l.b16 %v202
      %v311 = vunpack.c.l.b16 %v203
      %v312 = vunpack.c.l.b16 %v204
      %v313 = vunpack.c.l.b16 %v205
      %v314 = vunpack.c.l.b16 %v206
      %v315 = vunpack.c.l.b16 %v207
      %v316 = vunpack.c.l.b16 %v208
      %v317 = vunpack.c.l.b16 %v209
      %v318 = vunpack.c.l.b16 %v210
      %v319 = vunpack.c.l.b16 %v211
      %v320 = vunpack.c.l.b16 %v212
      %v321 = vunpack.c.l.b16 %v213
      %v322 = vunpack.c.l.b16 %v214
      %v323 = vunpack.c.l.b16 %v215
      %v324 = vpack.c.b16 %v277, %v276
      %v325 = vpack.c.b16 %v279, %v278
      %v326 = vpack.c.b16 %v281, %v280
      %v327 = vpack.c.b16 %v283, %v282
      %v328 = vpack.c.b16 %v285, %v284
      %v329 = vpack.c.b16 %v287, %v286
      %v330 = vpack.c.b16 %v289, %v288
      %v331 = vpack.c.b16 %v291, %v290
      %v332 = vpack.c.b16 %v293, %v292
      %v333 = vpack.c.b16 %v295, %v294
      %v334 = vpack.c.b16 %v297, %v296
      %v335 = vpack.c.b16 %v299, %v298
      %v336 = vpack.c.b16 %v301, %v300
      %v337 = vpack.c.b16 %v303, %v302
      %v338 = vpack.c.b16 %v305, %v304
      %v339 = vpack.c.b16 %v307, %v306
      %v340 = vpack.c.b16 %v309, %v308
      %v341 = vpack.c.b16 %v311, %v310
      %v342 = vpack.c.b16 %v313, %v312
      %v343 = vpack.c.b16 %v315, %v314
      %v344 = vpack.c.b16 %v317, %v316
      %v345 = vpack.c.b16 %v319, %v318
      %v346 = vpack.c.b16 %v321, %v320
      %v347 = vpack.c.b16 %v323, %v322
      %372 = vmatpush.bf16.msra.mxu0 %v331
      %373 = vmatpush.bf16.msra.mxu0 %v330
      %374 = vmatpush.bf16.msra.mxu0 %v329
      %375 = vmatpush.bf16.msra.mxu0 %v328
      %376 = vmatpush.bf16.msra.mxu0 %v327
      %377 = vmatpush.bf16.msra.mxu0 %v326
      %378 = vmatpush.bf16.msra.mxu0 %v325
      %379 = vmatpush.bf16.msra.mxu0 %v324
      %380 = vmatmul.bf16.gmra.mxu0 %v222
      %v381 = vpop.f32.mrf.mxu0
      %v382 = vadd.f32 %v218, %v381
      %v383 = vpop.f32.mrf.mxu0
      %384 = vdwg.mxu0
      %385 = vmatpush.bf16.msra.mxu0 %v339
      %386 = vmatpush.bf16.msra.mxu0 %v338
      %387 = vmatpush.bf16.msra.mxu0 %v337
      %388 = vmatpush.bf16.msra.mxu0 %v336
      %389 = vmatpush.bf16.msra.mxu0 %v335
      %390 = vmatpush.bf16.msra.mxu0 %v334
      %391 = vmatpush.bf16.msra.mxu0 %v333
      %392 = vmatpush.bf16.msra.mxu0 %v332
      %393 = vmatmul.bf16.gmra.mxu0 %v223
      %v394 = vpop.f32.mrf.mxu0
      %v395 = vadd.f32 %v382, %v394
      %v396 = vpop.f32.mrf.mxu0
      %397 = vdwg.mxu0
      %398 = vmatpush.bf16.msra.mxu0 %v347
      %399 = vmatpush.bf16.msra.mxu0 %v346
      %400 = vmatpush.bf16.msra.mxu0 %v345
      %401 = vmatpush.bf16.msra.mxu0 %v344
      %402 = vmatpush.bf16.msra.mxu0 %v343
      %403 = vmatpush.bf16.msra.mxu0 %v342
      %404 = vmatpush.bf16.msra.mxu0 %v341
      %405 = vmatpush.bf16.msra.mxu0 %v340
      %406 = vmatmul.bf16.gmra.mxu0 %v224
      %v407 = vpop.f32.mrf.mxu0
      %v408 = vadd.f32 %v395, %v407
      %v409 = vpop.f32.mrf.mxu0
      %410 = vdwg.mxu0
      %v411 = vmax.f32 %v408, 0.0
      %vm412 = vcmask 1043456
      %v413 = vsel %vm412, %v411, 0.0
      %v414 = vrot.slane %v413, 4
      %v415 = vadd.f32 %v413, %v414
      %v416 = vrot.slane %v415, 2
      %v417 = vadd.f32 %v415, %v416
      %v418 = vrot.slane %v417, 1
      %v419 = vadd.f32 %v417, %v418
      %v420 = vrcp.pop 4.0
      %v421 = vmul.f32 4.0, %v420
      %v422 = vsub.f32 1.0, %v421
      %v423 = vmul.f32 %v420, %v422
      %v424 = vadd.f32 %v420, %v423
      %vm425 = vweird.f32 %v420
      %v426 = vsel %vm425, %v420, %v424
      %v427 = vmul.f32 %v419, %v426
      %428 = vst [vmem:[%s166] sm:$0x1] %v427
      %p429 = scmp.lt.s32.totalorder %s14, 1
      %s430 = scalar_select %p429, %s14, 1
      %s431 = scalar_lea.vmem %s3, %s430
      // Predicated region
      $region33: #{condition_net_forward.5} parent=31 // pred_check
        %p432 = pneg %p100
      $region34: #{condition_net_forward.5} parent=31 // pred_check_branch
        %434 = sbr.rel (%p432) target = $region36
      $region35: #{condition_net_forward.5} parent=31 // pred_region
        _
      $region36: #{condition_net_forward.5} parent=31 // pred_fallthru
        _
    $region32: #{condition_net_forward.5} parent=5 // pred_fallthru
      _
    %p435 = scmp.le.s32.totalorder 2, %s9
    // Predicated region
    $region37: #{condition_net_forward.5} parent=5 // pred_check
      %p436 = pneg %p435
    $region38: #{condition_net_forward.5} parent=5 // pred_check_branch
      %438 = sbr.rel (%p436) target = $region40
    $region39: #{condition_net_forward.5} parent=5 // pred_region
      %s439 = ssub.s32 %s9, 2
      // Predicated region
      $region41: #{condition_net_forward.5} parent=39 // pred_check
        %p440 = pneg %p106
      $region42: #{condition_net_forward.5} parent=39 // pred_check_branch
        %442 = sbr.rel (%p440) target = $region44
      $region43: #{condition_net_forward.5} parent=39 // pred_region
        %p443 = scmp.lt.s32.totalorder %s15, 1
        %s444 = scalar_select %p443, %s15, 1
        %s445 = scalar_lea.vmem %s3, %s444
      $region44: #{condition_net_forward.5} parent=39 // pred_fallthru
        _
    $region40: #{condition_net_forward.5} parent=5 // pred_fallthru
      _
  $region6: #{condition_net_forward.5} parent=0 // loop_footer
    %s13 = sadd.s32 1, %s9
  $region7: #{condition_net_forward.5} parent=0 // loop_footer_branch
    %8 = sbr.rel target = $region3
  $region8: #{condition_net_forward.5} parent=0 // loop_exit
    _

</llo_original>
